<compile_context>
chip_gen: v7x
topology: tpu7x:2x2x1
jax: 0.10.0
libtpu: 0.0.40
codegen_flags: <defaults>
</compile_context>

<pallas_src>
import math
from functools import partial

import jax
import jax.numpy as jnp
from jax.experimental import pallas as pl
from jax.experimental.pallas import tpu as pltpu


def _round_up(x, m):
    return ((x + m - 1) // m) * m


# ---------------- Kernel 1: edge-wise message MLP ----------------
# h   = x_i @ (W1a - W1b)^T + x_j @ W1b^T + b1        (algebraic fold of x_j - x_i)
# msg = relu(h) @ W2^T + b2
# Weights arrive pre-transposed ([in, out]) and pre-cast to bf16; biases f32.
def _edge_mlp_kernel(xi_ref, xj_ref, w1a_ref, w1b_ref, b1_ref, w2_ref, b2_ref,
                     msg_ref):
    h = (jnp.dot(xi_ref[...], w1a_ref[...], preferred_element_type=jnp.float32)
         + jnp.dot(xj_ref[...], w1b_ref[...], preferred_element_type=jnp.float32)
         + b1_ref[...])
    h = jnp.maximum(h, 0.0)
    msg_ref[...] = (jnp.dot(h.astype(jnp.bfloat16), w2_ref[...],
                            preferred_element_type=jnp.float32)
                    + b2_ref[...])


# ---------------- Kernel 2: per-type masked multi-head self-attention ----------------
# grid = (num_query_tiles, num_types); type axis is the sequential accumulator axis.
def _type_attn_kernel(n_heads, ninp_ref, xq_ref, xkv_ref, bias_ref, omask_ref,
                      wq_ref, wk_ref, wv_ref, bq_ref, bk_ref, bv_ref,
                      wo_ref, bo_ref, out_ref):
    t = pl.program_id(1)

    @pl.when(t == 0)
    def _():
        # final output starts as node_inp + node_inp_t; per-type deltas add on top
        out_ref[...] = ninp_ref[...] + xq_ref[...]

    xq = xq_ref[...]                                   # [tq, D] f32 (query tile)
    xq_bf = xq.astype(jnp.bfloat16)
    xkv_bf = xkv_ref[...].astype(jnp.bfloat16)         # [Np, D]  (all keys/values)
    bias = bias_ref[0]                                 # [1, Np] additive key mask (0 / -1e30)
    hd = wq_ref.shape[-1]
    scale = 1.0 / math.sqrt(hd)

    acc = None
    for h in range(n_heads):
        # per-head projections with pre-split [D, hd] weights (no lane slicing)
        qh = (jnp.dot(xq_bf, wq_ref[0, h], preferred_element_type=jnp.float32)
              + bq_ref[0, h])                          # [tq, hd]
        kh = (jnp.dot(xkv_bf, wk_ref[0, h], preferred_element_type=jnp.float32)
              + bk_ref[0, h])                          # [Np, hd]
        vh = (jnp.dot(xkv_bf, wv_ref[0, h], preferred_element_type=jnp.float32)
              + bv_ref[0, h])                          # [Np, hd]

        s = jax.lax.dot_general(                       # q @ k^T, contraction on hd
            qh.astype(jnp.bfloat16), kh.astype(jnp.bfloat16),
            (((1,), (1,)), ((), ())),
            preferred_element_type=jnp.float32) * scale + bias      # [tq, Np]

        s = s - jnp.max(s, axis=-1, keepdims=True)
        p = jnp.exp(s)
        p = p * pl.reciprocal(jnp.sum(p, axis=-1, keepdims=True), approx=True)

        ctx = jnp.dot(p.astype(jnp.bfloat16), vh.astype(jnp.bfloat16),
                      preferred_element_type=jnp.float32)           # [tq, hd]
        # project each head with its [hd, D] slice of W_out and accumulate (no concat)
        proj = jnp.dot(ctx.astype(jnp.bfloat16), wo_ref[0, h],
                       preferred_element_type=jnp.float32)          # [tq, D]
        acc = proj if acc is None else acc + proj

    attn = acc + bo_ref[0]                             # [tq, D]
    # omask = 0.5 where node is of type t and group size > 1, else 0:
    # (x_t + attn)/2 == x_t + 0.5*(attn - x_t)
    out_ref[...] = out_ref[...] + omask_ref[0] * (attn - xq)


# ---------------- Wrapper ----------------
def shape_attention_module_forward(node_inp, node_type, edge_index, params, n_heads):
    f32, bf16 = jnp.float32, jnp.bfloat16
    N, D = node_inp.shape
    T = params["w_in"].shape[0]
    H = n_heads
    hd = D // H

    # ---------- Stage 1: edge MLP (Pallas) + mean scatter (XLA) ----------
    src = edge_index[0]            # PyG convention: row 0 = source j
    dst = edge_index[1]            # row 1 = target i (aggregation target)
    E = src.shape[0]

    x_i = node_inp[dst].astype(bf16)
    x_j = node_inp[src].astype(bf16)

    tE = min(256, _round_up(E, 8))
    E_pad = _round_up(E, tE)
    if E_pad != E:
        pad = ((0, E_pad - E), (0, 0))
        x_i = jnp.pad(x_i, pad)
        x_j = jnp.pad(x_j, pad)

    # fold (x_j - x_i) @ W1b^T  ==>  x_i @ (W1a - W1b)^T + x_j @ W1b^T ; pre-transpose.
    w1a_t = (params["w1a"] - params["w1b"]).T.astype(bf16)    # [D_in, D_out]
    w1b_t = params["w1b"].T.astype(bf16)
    w2_t = params["w2"].T.astype(bf16)
    b1 = params["b1"].astype(f32)
    b2 = params["b2"].astype(f32)

    ne = E_pad // tE
    cost1 = pl.CostEstimate(
        flops=int(3 * 2 * E_pad * D * D),
        transcendentals=0,
        bytes_accessed=int(2 * E_pad * D * 2 + 3 * D * D * 2 + E_pad * D * 4))

    msg = pl.pallas_call(
        _edge_mlp_kernel,
        out_shape=jax.ShapeDtypeStruct((E_pad, D), f32),
        grid=(ne,),
        in_specs=[
            pl.BlockSpec((tE, D), lambda e: (e, 0)),   # x_i tile
            pl.BlockSpec((tE, D), lambda e: (e, 0)),   # x_j tile
            pl.BlockSpec((D, D), lambda e: (0, 0)),    # (W1a - W1b)^T
            pl.BlockSpec((D, D), lambda e: (0, 0)),    # W1b^T
            pl.BlockSpec((1, D), lambda e: (0, 0)),    # b1
            pl.BlockSpec((D, D), lambda e: (0, 0)),    # W2^T
            pl.BlockSpec((1, D), lambda e: (0, 0)),    # b2
        ],
        out_specs=pl.BlockSpec((tE, D), lambda e: (e, 0)),
        compiler_params=pltpu.CompilerParams(
            dimension_semantics=("parallel",),
            vmem_limit_bytes=32 * 1024 * 1024),
        cost_estimate=cost1,
    )(x_i, x_j, w1a_t, w1b_t, b1, w2_t, b2)
    msg = msg[:E]

    # mean aggregation by target node: data-dependent scatter stays in XLA
    # (replaces the previous dense [N, E] adjacency matmul inside the kernel).
    deg = jnp.zeros((N,), f32).at[dst].add(1.0)
    node_inp_t = (jnp.zeros((N, D), f32).at[dst].add(msg)
                  / jnp.maximum(deg, 1.0)[:, None])

    # ---------- Stage 2: per-type masked MHA (Pallas) ----------
    tq = min(128, _round_up(N, 8))
    N_pad = _round_up(N, tq)
    nq = N_pad // tq

    if N_pad != N:
        rpad = ((0, N_pad - N), (0, 0))
        node_inp_p = jnp.pad(node_inp.astype(f32), rpad)
        xt_p = jnp.pad(node_inp_t, rpad)
        node_type_p = jnp.pad(node_type, (0, N_pad - N), constant_values=-1)
    else:
        node_inp_p = node_inp.astype(f32)
        xt_p = node_inp_t
        node_type_p = node_type

    # per-type masks / group-size gates (glue)
    type_ids = jnp.arange(T, dtype=node_type_p.dtype)
    onehot = (node_type_p[None, :] == type_ids[:, None]).astype(f32)       # [T, Np]
    counts = onehot.sum(axis=-1)
    attn_bias = jnp.where(onehot > 0.0, 0.0, -1e30).reshape(T, 1, N_pad)   # additive key mask
    oscale = jnp.where(counts > 1.0, 0.5, 0.0)
    omask = (onehot * oscale[:, None]).reshape(T, N_pad, 1)

    # per-type MHA params: pre-split per head, pre-transposed to [in, out], bf16
    w_in = params["w_in"]                                                  # [T, 3D, D] (out,in)
    wq = w_in[:, 0 * D:1 * D, :].reshape(T, H, hd, D).transpose(0, 1, 3, 2).astype(bf16)
    wk = w_in[:, 1 * D:2 * D, :].reshape(T, H, hd, D).transpose(0, 1, 3, 2).astype(bf16)
    wv = w_in[:, 2 * D:3 * D, :].reshape(T, H, hd, D).transpose(0, 1, 3, 2).astype(bf16)
    b_in = params["b_in"][:, 0, :]                                         # [T, 3D]
    bq = b_in[:, 0 * D:1 * D].reshape(T, H, 1, hd).astype(f32)
    bk = b_in[:, 1 * D:2 * D].reshape(T, H, 1, hd).astype(f32)
    bv = b_in[:, 2 * D:3 * D].reshape(T, H, 1, hd).astype(f32)
    wo = params["w_out"].transpose(0, 2, 1).reshape(T, H, hd, D).astype(bf16)  # [T,H,hd,D]
    bo = params["b_out"].astype(f32)                                       # [T, 1, D]

    cost2 = pl.CostEstimate(
        flops=int(T * (3 * 2 * N_pad * D * D + 2 * 2 * N_pad * N_pad * D
                       + 2 * N_pad * D * D)),
        transcendentals=int(T * H * N_pad * N_pad),
        bytes_accessed=int(3 * N_pad * D * 4 + T * (4 * D * D * 2 + 2 * N_pad * 4)
                           + N_pad * D * 4))

    # TODO(synk): further optimization would bucket nodes by type (scalar-prefetched
    # offsets via PrefetchScalarGridSpec) so each type attends only over its compact
    # n_t x n_t block instead of the full N keys.
    out = pl.pallas_call(
        partial(_type_attn_kernel, H),
        out_shape=jax.ShapeDtypeStruct((N_pad, D), f32),
        grid=(nq, T),
        in_specs=[
            pl.BlockSpec((tq, D), lambda q, t: (q, 0)),              # node_inp (query tile)
            pl.BlockSpec((tq, D), lambda q, t: (q, 0)),              # node_inp_t (query tile)
            pl.BlockSpec((N_pad, D), lambda q, t: (0, 0)),           # node_inp_t (keys/values)
            pl.BlockSpec((1, 1, N_pad), lambda q, t: (t, 0, 0)),     # additive key mask
            pl.BlockSpec((1, tq, 1), lambda q, t: (t, q, 0)),        # output gate (0 / 0.5)
            pl.BlockSpec((1, H, D, hd), lambda q, t: (t, 0, 0, 0)),  # wq per head
            pl.BlockSpec((1, H, D, hd), lambda q, t: (t, 0, 0, 0)),  # wk per head
            pl.BlockSpec((1, H, D, hd), lambda q, t: (t, 0, 0, 0)),  # wv per head
            pl.BlockSpec((1, H, 1, hd), lambda q, t: (t, 0, 0, 0)),  # bq per head
            pl.BlockSpec((1, H, 1, hd), lambda q, t: (t, 0, 0, 0)),  # bk per head
            pl.BlockSpec((1, H, 1, hd), lambda q, t: (t, 0, 0, 0)),  # bv per head
            pl.BlockSpec((1, H, hd, D), lambda q, t: (t, 0, 0, 0)),  # w_out per head
            pl.BlockSpec((1, 1, D), lambda q, t: (t, 0, 0)),         # b_out
        ],
        out_specs=pl.BlockSpec((tq, D), lambda q, t: (q, 0)),
        compiler_params=pltpu.CompilerParams(
            dimension_semantics=("parallel", "arbitrary"),
            vmem_limit_bytes=32 * 1024 * 1024),
        cost_estimate=cost2,
    )(node_inp_p, xt_p, xt_p, attn_bias, omask,
      wq, wk, wv, bq, bk, bv, wo, bo)
    return out[:N]


# ---------------- Pure-JAX f32 reference (same semantics) ----------------
def reference_forward(node_inp, node_type, edge_index, params, n_heads):
    N, D = node_inp.shape
    src, dst = edge_index[0], edge_index[1]
    x_i, x_j = node_inp[dst], node_inp[src]
    feat = jnp.concatenate([x_i, x_j - x_i], axis=-1)
    w1 = jnp.concatenate([params["w1a"], params["w1b"]], axis=-1)
    h = jnp.maximum(feat @ w1.T + params["b1"], 0.0)
    msg = h @ params["w2"].T + params["b2"]
    deg = jnp.zeros((N,)).at[dst].add(1.0)
    node_inp_t = jnp.zeros((N, D)).at[dst].add(msg) / jnp.maximum(deg, 1.0)[:, None]

    T = params["w_in"].shape[0]
    hd = D // n_heads
    out_t = node_inp_t
    for t in range(T):
        mask = node_type == t
        count = mask.sum()
        x = node_inp_t
        qkv = x @ params["w_in"][t].T + params["b_in"][t, 0]
        q, k, v = qkv[:, :D], qkv[:, D:2 * D], qkv[:, 2 * D:]
        heads = []
        for hh in range(n_heads):
            qh = q[:, hh * hd:(hh + 1) * hd]
            kh = k[:, hh * hd:(hh + 1) * hd]
            vh = v[:, hh * hd:(hh + 1) * hd]
            s = qh @ kh.T / math.sqrt(hd)
            s = jnp.where(mask[None, :], s, -1e30)
            p = jax.nn.softmax(s, axis=-1)
            heads.append(p @ vh)
        ctx = jnp.concatenate(heads, axis=-1)
        attn = ctx @ params["w_out"][t].T + params["b_out"][t, 0]
        upd = jnp.where(count > 1, 0.5, 0.0)
        out_t = out_t + jnp.where(mask[:, None], upd * (attn - x), 0.0)
    return node_inp + out_t


if __name__ == "__main__":
    # small shapes consistent with the module: in_dim == out_dim (required by the
    # residual add), n_heads divides in_dim; D=128 keeps blocks lane-dense.
    N, D, T, H, E = 16, 128, 3, 4, 48     # nodes, feature dim, num_types, n_heads, edges

    key = jax.random.PRNGKey(0)
    keys = jax.random.split(key, 12)
    node_inp = jax.random.normal(keys[0], (N, D), jnp.float32)
    node_type = jax.random.randint(keys[1], (N,), 0, T)
    edge_index = jax.random.randint(keys[2], (2, E), 0, N)

    s = 0.05
    params = dict(
        # ShapeAttention MLP: Linear(2D, D) split into [W1a | W1b], then Linear(D, D)
        w1a=s * jax.random.normal(keys[3], (D, D), jnp.float32),
        w1b=s * jax.random.normal(keys[4], (D, D), jnp.float32),
        b1=s * jax.random.normal(keys[5], (1, D), jnp.float32),
        w2=s * jax.random.normal(keys[6], (D, D), jnp.float32),
        b2=s * jax.random.normal(keys[7], (1, D), jnp.float32),
        # per-type nn.MultiheadAttention: in_proj [3D, D] + bias, out_proj [D, D] + bias
        w_in=s * jax.random.normal(keys[8], (T, 3 * D, D), jnp.float32),
        b_in=s * jax.random.normal(keys[9], (T, 1, 3 * D), jnp.float32),
        w_out=s * jax.random.normal(keys[10], (T, D, D), jnp.float32),
        b_out=s * jax.random.normal(keys[11], (T, 1, D), jnp.float32),
    )

    out = shape_attention_module_forward(node_inp, node_type, edge_index, params, H)
    out = jax.block_until_ready(out)

    ref = reference_forward(node_inp, node_type, edge_index, params, H)
    assert out.shape == (N, D)
    assert bool(jnp.allclose(out, ref, atol=2e-2, rtol=2e-2)), \
        float(jnp.max(jnp.abs(out - ref)))
    print("KERNEL_OK")
</pallas_src>

<mosaic_0001>
module attributes {stable_mosaic.version = 11 : i64} {
  func.func @_edge_mlp_kernel(%arg0: i32, %arg1: memref<48x128xbf16, #tpu.memory_space<vmem>>, %arg2: memref<48x128xbf16, #tpu.memory_space<vmem>>, %arg3: memref<128x128xbf16, #tpu.memory_space<vmem>>, %arg4: memref<128x128xbf16, #tpu.memory_space<vmem>>, %arg5: memref<1x128xf32, #tpu.memory_space<vmem>>, %arg6: memref<128x128xbf16, #tpu.memory_space<vmem>>, %arg7: memref<1x128xf32, #tpu.memory_space<vmem>>, %arg8: memref<48x128xf32, #tpu.memory_space<vmem>>) attributes {dimension_semantics = [#tpu.dimension_semantics<parallel>], iteration_bounds = array<i64: 1>, scalar_prefetch = 0 : i64, scratch_operands = 0 : i64, tpu.core_type = #tpu.core_type<tc>, window_params = [{transform_indices = @transform_0, window_bounds = array<i64: 48, 128>}, {transform_indices = @transform_1, window_bounds = array<i64: 48, 128>}, {pipeline_mode = #tpu.pipeline_mode<synchronous>, transform_indices = @transform_2, window_bounds = array<i64: 128, 128>}, {pipeline_mode = #tpu.pipeline_mode<synchronous>, transform_indices = @transform_3, window_bounds = array<i64: 128, 128>}, {pipeline_mode = #tpu.pipeline_mode<synchronous>, transform_indices = @transform_4, window_bounds = array<i64: 1, 128>}, {pipeline_mode = #tpu.pipeline_mode<synchronous>, transform_indices = @transform_5, window_bounds = array<i64: 128, 128>}, {pipeline_mode = #tpu.pipeline_mode<synchronous>, transform_indices = @transform_6, window_bounds = array<i64: 1, 128>}, {transform_indices = @transform_7, window_bounds = array<i64: 48, 128>}]} {
    %c0 = arith.constant 0 : index
    %c0_0 = arith.constant 0 : index
    %0 = vector.load %arg1[%c0, %c0_0] : memref<48x128xbf16, #tpu.memory_space<vmem>>, vector<48x128xbf16>
    %c0_1 = arith.constant 0 : index
    %c0_2 = arith.constant 0 : index
    %1 = vector.load %arg3[%c0_1, %c0_2] : memref<128x128xbf16, #tpu.memory_space<vmem>>, vector<128x128xbf16>
    %cst = arith.constant dense<0.000000e+00> : vector<48x128xf32>
    %2 = tpu.matmul %0, %1, %cst {dimension_numbers = #tpu.dot_dimension_numbers<[1], [0], [0], [1], [0, 0, 1, 1], [], []>} : vector<48x128xbf16>, vector<128x128xbf16>, vector<48x128xf32> -> vector<48x128xf32>
    %c0_3 = arith.constant 0 : index
    %c0_4 = arith.constant 0 : index
    %3 = vector.load %arg2[%c0_3, %c0_4] : memref<48x128xbf16, #tpu.memory_space<vmem>>, vector<48x128xbf16>
    %c0_5 = arith.constant 0 : index
    %c0_6 = arith.constant 0 : index
    %4 = vector.load %arg4[%c0_5, %c0_6] : memref<128x128xbf16, #tpu.memory_space<vmem>>, vector<128x128xbf16>
    %cst_7 = arith.constant dense<0.000000e+00> : vector<48x128xf32>
    %5 = tpu.matmul %3, %4, %cst_7 {dimension_numbers = #tpu.dot_dimension_numbers<[1], [0], [0], [1], [0, 0, 1, 1], [], []>} : vector<48x128xbf16>, vector<128x128xbf16>, vector<48x128xf32> -> vector<48x128xf32>
    %6 = arith.addf %2, %5 : vector<48x128xf32>
    %c0_8 = arith.constant 0 : index
    %c0_9 = arith.constant 0 : index
    %7 = vector.load %arg5[%c0_8, %c0_9] : memref<1x128xf32, #tpu.memory_space<vmem>>, vector<1x128xf32>
    %8 = vector.broadcast %7 : vector<1x128xf32> to vector<48x128xf32>
    %9 = arith.addf %6, %8 : vector<48x128xf32>
    %cst_10 = arith.constant 0.000000e+00 : f32
    %10 = vector.broadcast %cst_10 : f32 to vector<48x128xf32>
    %11 = arith.maximumf %9, %10 : vector<48x128xf32>
    %12 = arith.truncf %11 : vector<48x128xf32> to vector<48x128xbf16>
    %c0_11 = arith.constant 0 : index
    %c0_12 = arith.constant 0 : index
    %13 = vector.load %arg6[%c0_11, %c0_12] : memref<128x128xbf16, #tpu.memory_space<vmem>>, vector<128x128xbf16>
    %cst_13 = arith.constant dense<0.000000e+00> : vector<48x128xf32>
    %14 = tpu.matmul %12, %13, %cst_13 {dimension_numbers = #tpu.dot_dimension_numbers<[1], [0], [0], [1], [0, 0, 1, 1], [], []>} : vector<48x128xbf16>, vector<128x128xbf16>, vector<48x128xf32> -> vector<48x128xf32>
    %c0_14 = arith.constant 0 : index
    %c0_15 = arith.constant 0 : index
    %15 = vector.load %arg7[%c0_14, %c0_15] : memref<1x128xf32, #tpu.memory_space<vmem>>, vector<1x128xf32>
    %16 = vector.broadcast %15 : vector<1x128xf32> to vector<48x128xf32>
    %17 = arith.addf %14, %16 : vector<48x128xf32>
    %c0_16 = arith.constant 0 : index
    %c0_17 = arith.constant 0 : index
    %18 = vector.load %arg8[%c0_16, %c0_17] : memref<48x128xf32, #tpu.memory_space<vmem>>, vector<48x128xf32>
    tpu.vector_store %arg8[%c0_16, %c0_17], %17 {strides = array<i32>} : memref<48x128xf32, #tpu.memory_space<vmem>>, vector<48x128xf32>,
    return
  }
  func.func @transform_0(%arg0: i32) -> (i32, i32) {
    %c0_i32 = arith.constant 0 : i32
    %c0_i32_0 = arith.constant 0 : i32
    return %arg0, %c0_i32 : i32, i32
  }
  func.func @transform_1(%arg0: i32) -> (i32, i32) {
    %c0_i32 = arith.constant 0 : i32
    %c0_i32_0 = arith.constant 0 : i32
    return %arg0, %c0_i32 : i32, i32
  }
  func.func @transform_2(%arg0: i32) -> (i32, i32) {
    %c0_i32 = arith.constant 0 : i32
    %c0_i32_0 = arith.constant 0 : i32
    %c0_i32_1 = arith.constant 0 : i32
    return %c0_i32, %c0_i32_0 : i32, i32
  }
  func.func @transform_3(%arg0: i32) -> (i32, i32) {
    %c0_i32 = arith.constant 0 : i32
    %c0_i32_0 = arith.constant 0 : i32
    %c0_i32_1 = arith.constant 0 : i32
    return %c0_i32, %c0_i32_0 : i32, i32
  }
  func.func @transform_4(%arg0: i32) -> (i32, i32) {
    %c0_i32 = arith.constant 0 : i32
    %c0_i32_0 = arith.constant 0 : i32
    %c0_i32_1 = arith.constant 0 : i32
    return %c0_i32, %c0_i32_0 : i32, i32
  }
  func.func @transform_5(%arg0: i32) -> (i32, i32) {
    %c0_i32 = arith.constant 0 : i32
    %c0_i32_0 = arith.constant 0 : i32
    %c0_i32_1 = arith.constant 0 : i32
    return %c0_i32, %c0_i32_0 : i32, i32
  }
  func.func @transform_6(%arg0: i32) -> (i32, i32) {
    %c0_i32 = arith.constant 0 : i32
    %c0_i32_0 = arith.constant 0 : i32
    %c0_i32_1 = arith.constant 0 : i32
    return %c0_i32, %c0_i32_0 : i32, i32
  }
  func.func @transform_7(%arg0: i32) -> (i32, i32) {
    %c0_i32 = arith.constant 0 : i32
    %c0_i32_0 = arith.constant 0 : i32
    return %arg0, %c0_i32 : i32, i32
  }
}

</mosaic_0001>

<llo_original>
// kernel: tpu_custom_call.1
$region0: #{tpu_custom_call.1}
  #allocation0 [shape = 'u32[]', space=smem, size = 0x4, offset = 0x4, fixed_abs, tag = 'smem constant byte address 0x4 - core index']
  #allocation1 [shape = 'u32[144,128]{1,0:T(1,128)}', space=vmem, size = 0x12000, scoped, tag = 'internal scratch']
  %s0 = inlined_call_operand.hbm [shape: bf16[48,128], index: 0, kind: input, shape index: {}]
  %s1 = inlined_call_operand.hbm [shape: bf16[48,128], index: 1, kind: input, shape index: {}]
  %s2 = inlined_call_operand.hbm [shape: bf16[128,128], index: 2, kind: input, shape index: {}]
  %s3 = inlined_call_operand.hbm [shape: bf16[128,128], index: 3, kind: input, shape index: {}]
  %s4 = inlined_call_operand.vmem [shape: f32[1,128], index: 4, kind: input, shape index: {}]
  %s5 = inlined_call_operand.hbm [shape: bf16[128,128], index: 5, kind: input, shape index: {}]
  %s6 = inlined_call_operand.vmem [shape: f32[1,128], index: 6, kind: input, shape index: {}]
  %s7 = inlined_call_operand.hbm [shape: f32[48,128], index: 7, kind: output, shape index: {}]
  %s8 = sld [smem:[#allocation0]]
  $region58: #{tpu_custom_call.1} parent=0
    _
  %s10 = ssub.s32 1, %s8
  %s11 = scalar_select 0, %s10, %s8
  $region1: #{tpu_custom_call.1} parent=0
    #allocation2 [shape = 'u8[12288]{0}', space=vmem, size = 0x3000, scoped, tag = 'input window, operand 0, single buffered']
    #allocation3 [shape = 's32[1]{0}', space=sflag, size = 0x4, scoped, tag = 'scoped memory for tpu_custom_call.1']
    #allocation4 [shape = 's32[1]{0}', space=sflag, size = 0x4, scoped, tag = 'scoped memory for tpu_custom_call.1']
    #allocation5 [shape = 'u8[12288]{0}', space=vmem, size = 0x3000, scoped, tag = 'input window, operand 1, single buffered']
    #allocation6 [shape = 's32[1]{0}', space=sflag, size = 0x4, scoped, tag = 'scoped memory for tpu_custom_call.1']
    #allocation7 [shape = 'u8[32768]{0}', space=vmem, size = 0x8000, scoped, tag = 'input window, operand 2, single buffered']
    #allocation8 [shape = 'u8[32768]{0}', space=vmem, size = 0x8000, scoped, tag = 'input window, operand 3, single buffered']
    #allocation9 [shape = 's32[1]{0}', space=sflag, size = 0x4, scoped, tag = 'scoped memory for tpu_custom_call.1']
    #allocation10 [shape = 'u8[32768]{0}', space=vmem, size = 0x8000, scoped, tag = 'input window, operand 5, single buffered']
    #allocation11 [shape = 'u8[24576]{0}', space=vmem, size = 0x6000, scoped, tag = 'output window, operand 0, single buffered']
    %12 = vsyncpa [#allocation3], 0
    %13 = vsyncpa [#allocation6], 0
    %14 = vsyncpa [#allocation9], 0
    %15 = vsyncpa [#allocation4], 0
    // Predicated region
    $region2: #{tpu_custom_call.1} parent=1 // pred_check
      _
    $region3: #{tpu_custom_call.1} parent=1 // pred_check_branch
      %17 = sbr.rel (0) target = $region5
    $region4: #{tpu_custom_call.1} parent=1 // pred_region
      %s19 = ssub.s32 384, 384
      %20 = vsyncadd [#allocation3], %s19
      %s21 = sshll.u32 [#allocation2], 4
      %s22 = int_to_ptr.vmem [resolvable:$true] %s21
      %27 = dma.hbm_to_vmem [thread:$0]  %s0, 384, %s22, [#allocation3], 64, 64, 4
    $region5: #{tpu_custom_call.1} parent=1 // pred_fallthru
      _
    // Predicated region
    $region6: #{tpu_custom_call.1} parent=1 // pred_check
      _
    $region7: #{tpu_custom_call.1} parent=1 // pred_check_branch
      %29 = sbr.rel (0) target = $region9
    $region8: #{tpu_custom_call.1} parent=1 // pred_region
      %s31 = ssub.s32 384, 384
      %32 = vsyncadd [#allocation6], %s31
      %s33 = sshll.u32 [#allocation5], 4
      %s34 = int_to_ptr.vmem [resolvable:$true] %s33
      %39 = dma.hbm_to_vmem [thread:$0]  %s1, 384, %s34, [#allocation6], 64, 64, 4
    $region9: #{tpu_custom_call.1} parent=1 // pred_fallthru
      _
    // Predicated region
    $region10: #{tpu_custom_call.1} parent=1 // pred_check
      _
    $region11: #{tpu_custom_call.1} parent=1 // pred_check_branch
      %41 = sbr.rel (0) target = $region13
    $region12: #{tpu_custom_call.1} parent=1 // pred_region
      %s43 = ssub.s32 1024, 1024
      %44 = vsyncadd [#allocation6], %s43
      %s45 = sshll.u32 [#allocation7], 4
      %s46 = int_to_ptr.vmem [resolvable:$true] %s45
      %51 = dma.hbm_to_vmem [thread:$0]  %s2, 1024, %s46, [#allocation6], 64, 64, 4
    $region13: #{tpu_custom_call.1} parent=1 // pred_fallthru
      _
    // Predicated region
    $region14: #{tpu_custom_call.1} parent=1 // pred_check
      _
    $region15: #{tpu_custom_call.1} parent=1 // pred_check_branch
      %53 = sbr.rel (0) target = $region17
    $region16: #{tpu_custom_call.1} parent=1 // pred_region
      %s55 = ssub.s32 1024, 1024
      %56 = vsyncadd [#allocation9], %s55
      %s57 = sshll.u32 [#allocation8], 4
      %s58 = int_to_ptr.vmem [resolvable:$true] %s57
      %63 = dma.hbm_to_vmem [thread:$0]  %s3, 1024, %s58, [#allocation9], 64, 64, 4
    $region17: #{tpu_custom_call.1} parent=1 // pred_fallthru
      _
    // Predicated region
    $region18: #{tpu_custom_call.1} parent=1 // pred_check
      _
    $region19: #{tpu_custom_call.1} parent=1 // pred_check_branch
      %65 = sbr.rel (0) target = $region21
    $region20: #{tpu_custom_call.1} parent=1 // pred_region
      _
    $region21: #{tpu_custom_call.1} parent=1 // pred_fallthru
      _
    // Predicated region
    $region22: #{tpu_custom_call.1} parent=1 // pred_check
      _
    $region23: #{tpu_custom_call.1} parent=1 // pred_check_branch
      %67 = sbr.rel (0) target = $region25
    $region24: #{tpu_custom_call.1} parent=1 // pred_region
      %s69 = ssub.s32 1024, 1024
      %70 = vsyncadd [#allocation9], %s69
      %s71 = sshll.u32 [#allocation10], 4
      %s72 = int_to_ptr.vmem [resolvable:$true] %s71
      %77 = dma.hbm_to_vmem [thread:$0]  %s5, 1024, %s72, [#allocation9], 64, 64, 4
    $region25: #{tpu_custom_call.1} parent=1 // pred_fallthru
      _
    // Predicated region
    $region26: #{tpu_custom_call.1} parent=1 // pred_check
      _
    $region27: #{tpu_custom_call.1} parent=1 // pred_check_branch
      %79 = sbr.rel (0) target = $region29
    $region28: #{tpu_custom_call.1} parent=1 // pred_region
      _
    $region29: #{tpu_custom_call.1} parent=1 // pred_fallthru
      _
    // Predicated region
    $region30: #{tpu_custom_call.1} parent=1 // pred_check
      _
    $region31: #{tpu_custom_call.1} parent=1 // pred_check_branch
      %81 = sbr.rel (0) target = $region33
    $region32: #{tpu_custom_call.1} parent=1 // pred_region
      %82 = dma.done [#allocation3], 384
    $region33: #{tpu_custom_call.1} parent=1 // pred_fallthru
      _
    // Predicated region
    $region34: #{tpu_custom_call.1} parent=1 // pred_check
      _
    $region35: #{tpu_custom_call.1} parent=1 // pred_check_branch
      %84 = sbr.rel (0) target = $region37
    $region36: #{tpu_custom_call.1} parent=1 // pred_region
      %85 = dma.done [#allocation6], 384
    $region37: #{tpu_custom_call.1} parent=1 // pred_fallthru
      _
    // Predicated region
    $region38: #{tpu_custom_call.1} parent=1 // pred_check
      _
    $region39: #{tpu_custom_call.1} parent=1 // pred_check_branch
      %87 = sbr.rel (0) target = $region41
    $region40: #{tpu_custom_call.1} parent=1 // pred_region
      %88 = dma.done [#allocation6], 1024
    $region41: #{tpu_custom_call.1} parent=1 // pred_fallthru
      _
    // Predicated region
    $region42: #{tpu_custom_call.1} parent=1 // pred_check
      _
    $region43: #{tpu_custom_call.1} parent=1 // pred_check_branch
      %90 = sbr.rel (0) target = $region45
    $region44: #{tpu_custom_call.1} parent=1 // pred_region
      %91 = dma.done [#allocation9], 1024
    $region45: #{tpu_custom_call.1} parent=1 // pred_fallthru
      _
    // Predicated region
    $region46: #{tpu_custom_call.1} parent=1 // pred_check
      _
    $region47: #{tpu_custom_call.1} parent=1 // pred_check_branch
      %93 = sbr.rel (0) target = $region49
    $region48: #{tpu_custom_call.1} parent=1 // pred_region
      %94 = dma.done [#allocation9], 1024
    $region49: #{tpu_custom_call.1} parent=1 // pred_fallthru
      _
    %v96 = vld [vmem:[#allocation2] sm:$0xf]
    %v97 = vld [vmem:[#allocation2 + $0x4] sm:$0xf]
    %v98 = vld [vmem:[#allocation2 + $0x8] sm:$0xf]
    %v99 = vld [vmem:[#allocation2 + $0xc] sm:$0xf]
    %v100 = vld [vmem:[#allocation2 + $0x10] sm:$0xf]
    %v101 = vld [vmem:[#allocation2 + $0x14] sm:$0xf]
    %v102 = vld [vmem:[#allocation7] sm:$0xf]
    %v103 = vld [vmem:[#allocation7 + $0x4] sm:$0xf]
    %v104 = vld [vmem:[#allocation7 + $0x8] sm:$0xf]
    %v105 = vld [vmem:[#allocation7 + $0xc] sm:$0xf]
    %v106 = vld [vmem:[#allocation7 + $0x10] sm:$0xf]
    %v107 = vld [vmem:[#allocation7 + $0x14] sm:$0xf]
    %v108 = vld [vmem:[#allocation7 + $0x18] sm:$0xf]
    %v109 = vld [vmem:[#allocation7 + $0x1c] sm:$0xf]
    %v110 = vld [vmem:[#allocation7 + $0x20] sm:$0xf]
    %v111 = vld [vmem:[#allocation7 + $0x24] sm:$0xf]
    %v112 = vld [vmem:[#allocation7 + $0x28] sm:$0xf]
    %v113 = vld [vmem:[#allocation7 + $0x2c] sm:$0xf]
    %v114 = vld [vmem:[#allocation7 + $0x30] sm:$0xf]
    %v115 = vld [vmem:[#allocation7 + $0x34] sm:$0xf]
    %v116 = vld [vmem:[#allocation7 + $0x38] sm:$0xf]
    %v117 = vld [vmem:[#allocation7 + $0x3c] sm:$0xf]
    %v118 = vld [vmem:[#allocation5] sm:$0xf]
    %v119 = vld [vmem:[#allocation5 + $0x4] sm:$0xf]
    %v120 = vld [vmem:[#allocation5 + $0x8] sm:$0xf]
    %v121 = vld [vmem:[#allocation5 + $0xc] sm:$0xf]
    %v122 = vld [vmem:[#allocation5 + $0x10] sm:$0xf]
    %v123 = vld [vmem:[#allocation5 + $0x14] sm:$0xf]
    %v124 = vld [vmem:[#allocation8] sm:$0xf]
    %v125 = vld [vmem:[#allocation8 + $0x4] sm:$0xf]
    %v126 = vld [vmem:[#allocation8 + $0x8] sm:$0xf]
    %v127 = vld [vmem:[#allocation8 + $0xc] sm:$0xf]
    %v128 = vld [vmem:[#allocation8 + $0x10] sm:$0xf]
    %v129 = vld [vmem:[#allocation8 + $0x14] sm:$0xf]
    %v130 = vld [vmem:[#allocation8 + $0x18] sm:$0xf]
    %v131 = vld [vmem:[#allocation8 + $0x1c] sm:$0xf]
    %v132 = vld [vmem:[#allocation8 + $0x20] sm:$0xf]
    %v133 = vld [vmem:[#allocation8 + $0x24] sm:$0xf]
    %v134 = vld [vmem:[#allocation8 + $0x28] sm:$0xf]
    %v135 = vld [vmem:[#allocation8 + $0x2c] sm:$0xf]
    %v136 = vld [vmem:[#allocation8 + $0x30] sm:$0xf]
    %v137 = vld [vmem:[#allocation8 + $0x34] sm:$0xf]
    %v138 = vld [vmem:[#allocation8 + $0x38] sm:$0xf]
    %v139 = vld [vmem:[#allocation8 + $0x3c] sm:$0xf]
    %v146 = vunpack.c.l.b16 %v118
    %v147 = vunpack.c.l.b16 %v119
    %v148 = vunpack.c.l.b16 %v120
    %v149 = vunpack.c.l.b16 %v121
    %v150 = vunpack.c.l.b16 %v122
    %v151 = vunpack.c.l.b16 %v123
    %v152 = vpack.c.b16 %v147, %v146
    %v153 = vpack.c.b16 %v149, %v148
    %v154 = vpack.c.b16 %v151, %v150
    %v174 = vunpack.c.l.b16 %v124
    %v175 = vunpack.c.l.b16 %v125
    %v176 = vunpack.c.l.b16 %v126
    %v177 = vunpack.c.l.b16 %v127
    %v178 = vunpack.c.l.b16 %v128
    %v179 = vunpack.c.l.b16 %v129
    %v180 = vunpack.c.l.b16 %v130
    %v181 = vunpack.c.l.b16 %v131
    %v182 = vunpack.c.l.b16 %v132
    %v183 = vunpack.c.l.b16 %v133
    %v184 = vunpack.c.l.b16 %v134
    %v185 = vunpack.c.l.b16 %v135
    %v186 = vunpack.c.l.b16 %v136
    %v187 = vunpack.c.l.b16 %v137
    %v188 = vunpack.c.l.b16 %v138
    %v189 = vunpack.c.l.b16 %v139
    %v190 = vpack.c.b16 %v175, %v174
    %v191 = vpack.c.b16 %v177, %v176
    %v192 = vpack.c.b16 %v179, %v178
    %v193 = vpack.c.b16 %v181, %v180
    %v194 = vpack.c.b16 %v183, %v182
    %v195 = vpack.c.b16 %v185, %v184
    %v196 = vpack.c.b16 %v187, %v186
    %v197 = vpack.c.b16 %v189, %v188
    %206 = vmatprep.subr.bf16.mxu0 0
    %207 = vmatpush1.bf16.msra.mxu0 %v190
    %208 = vmatprep.subr.bf16.mxu0 0
    %209 = vmatpush1.bf16.msra.mxu0 %v191
    %210 = vmatprep.subr.bf16.mxu0 0
    %211 = vmatpush1.bf16.msra.mxu0 %v192
    %212 = vmatprep.subr.bf16.mxu0 0
    %213 = vmatpush1.bf16.msra.mxu0 %v193
    %214 = vmatprep.subr.bf16.mxu0 0
    %215 = vmatpush1.bf16.msra.mxu0 %v194
    %216 = vmatprep.subr.bf16.mxu0 0
    %217 = vmatpush1.bf16.msra.mxu0 %v195
    %218 = vmatprep.subr.bf16.mxu0 0
    %219 = vmatpush1.bf16.msra.mxu0 %v196
    %220 = vmatprep.subr.bf16.mxu0 0
    %221 = vmatpush1.bf16.msra.mxu0 %v197
    %222 = vmatprep.subr.bf16.mxu0 0
    %223 = vmatpush1.bf16.msra.mxu0 0
    %224 = vmatprep.subr.bf16.mxu0 0
    %225 = vmatpush1.bf16.msra.mxu0 0
    %226 = vmatprep.subr.bf16.mxu0 0
    %227 = vmatpush1.bf16.msra.mxu0 0
    %228 = vmatprep.subr.bf16.mxu0 0
    %229 = vmatpush1.bf16.msra.mxu0 0
    %230 = vmatprep.subr.bf16.mxu0 0
    %231 = vmatpush1.bf16.msra.mxu0 0
    %232 = vmatprep.subr.bf16.mxu0 0
    %233 = vmatpush1.bf16.msra.mxu0 0
    %234 = vmatprep.subr.bf16.mxu0 0
    %235 = vmatpush1.bf16.msra.mxu0 0
    %236 = vmatprep.subr.bf16.mxu0 0
    %237 = vmatpush1.bf16.msra.mxu0 0
    %238 = vmatprep.mubr.bf16.mxu0 0
    %239 = vmatmul.mubr.bf16.gmra.mrb[0].mxu0 %v152
    %v240 = vpop.f32.mrb[0].mxu0
    %v241 = vadd.f32 0.0, %v240
    %v242 = vpop.f32.mrb[0].mxu0
    %v243 = vpop.f32.mrb[0].mxu0
    %v244 = vadd.f32 0.0, %v243
    %v245 = vpop.f32.mrb[0].mxu0
    %246 = vmatprep.mubr.bf16.mxu0 0
    %247 = vmatmul.mubr.bf16.gmra.mrb[0].mxu0 %v153
    %v248 = vpop.f32.mrb[0].mxu0
    %v249 = vadd.f32 0.0, %v248
    %v250 = vpop.f32.mrb[0].mxu0
    %v251 = vpop.f32.mrb[0].mxu0
    %v252 = vadd.f32 0.0, %v251
    %v253 = vpop.f32.mrb[0].mxu0
    %254 = vmatprep.mubr.bf16.mxu0 0
    %255 = vmatmul.mubr.bf16.gmra.mrb[0].mxu0 %v154
    %v256 = vpop.f32.mrb[0].mxu0
    %v257 = vadd.f32 0.0, %v256
    %v258 = vpop.f32.mrb[0].mxu0
    %v259 = vpop.f32.mrb[0].mxu0
    %v260 = vadd.f32 0.0, %v259
    %v261 = vpop.f32.mrb[0].mxu0
    %262 = vdwg.mxu0
    %v269 = vunpack.c.l.b16 %v96
    %v270 = vunpack.c.l.b16 %v97
    %v271 = vunpack.c.l.b16 %v98
    %v272 = vunpack.c.l.b16 %v99
    %v273 = vunpack.c.l.b16 %v100
    %v274 = vunpack.c.l.b16 %v101
    %v275 = vpack.c.b16 %v270, %v269
    %v276 = vpack.c.b16 %v272, %v271
    %v277 = vpack.c.b16 %v274, %v273
    %v297 = vunpack.c.l.b16 %v102
    %v298 = vunpack.c.l.b16 %v103
    %v299 = vunpack.c.l.b16 %v104
    %v300 = vunpack.c.l.b16 %v105
    %v301 = vunpack.c.l.b16 %v106
    %v302 = vunpack.c.l.b16 %v107
    %v303 = vunpack.c.l.b16 %v108
    %v304 = vunpack.c.l.b16 %v109
    %v305 = vunpack.c.l.b16 %v110
    %v306 = vunpack.c.l.b16 %v111
    %v307 = vunpack.c.l.b16 %v112
    %v308 = vunpack.c.l.b16 %v113
    %v309 = vunpack.c.l.b16 %v114
    %v310 = vunpack.c.l.b16 %v115
    %v311 = vunpack.c.l.b16 %v116
    %v312 = vunpack.c.l.b16 %v117
    %v313 = vpack.c.b16 %v298, %v297
    %v314 = vpack.c.b16 %v300, %v299
    %v315 = vpack.c.b16 %v302, %v301
    %v316 = vpack.c.b16 %v304, %v303
    %v317 = vpack.c.b16 %v306, %v305
    %v318 = vpack.c.b16 %v308, %v307
    %v319 = vpack.c.b16 %v310, %v309
    %v320 = vpack.c.b16 %v312, %v311
    %329 = vmatprep.subr.bf16.mxu0 0
    %330 = vmatpush1.bf16.msra.mxu0 %v313
    %331 = vmatprep.subr.bf16.mxu0 0
    %332 = vmatpush1.bf16.msra.mxu0 %v314
    %333 = vmatprep.subr.bf16.mxu0 0
    %334 = vmatpush1.bf16.msra.mxu0 %v315
    %335 = vmatprep.subr.bf16.mxu0 0
    %336 = vmatpush1.bf16.msra.mxu0 %v316
    %337 = vmatprep.subr.bf16.mxu0 0
    %338 = vmatpush1.bf16.msra.mxu0 %v317
    %339 = vmatprep.subr.bf16.mxu0 0
    %340 = vmatpush1.bf16.msra.mxu0 %v318
    %341 = vmatprep.subr.bf16.mxu0 0
    %342 = vmatpush1.bf16.msra.mxu0 %v319
    %343 = vmatprep.subr.bf16.mxu0 0
    %344 = vmatpush1.bf16.msra.mxu0 %v320
    %345 = vmatprep.subr.bf16.mxu0 0
    %346 = vmatpush1.bf16.msra.mxu0 0
    %347 = vmatprep.subr.bf16.mxu0 0
    %348 = vmatpush1.bf16.msra.mxu0 0
    %349 = vmatprep.subr.bf16.mxu0 0
    %350 = vmatpush1.bf16.msra.mxu0 0
    %351 = vmatprep.subr.bf16.mxu0 0
    %352 = vmatpush1.bf16.msra.mxu0 0
    %353 = vmatprep.subr.bf16.mxu0 0
    %354 = vmatpush1.bf16.msra.mxu0 0
    %355 = vmatprep.subr.bf16.mxu0 0
    %356 = vmatpush1.bf16.msra.mxu0 0
    %357 = vmatprep.subr.bf16.mxu0 0
    %358 = vmatpush1.bf16.msra.mxu0 0
    %359 = vmatprep.subr.bf16.mxu0 0
    %360 = vmatpush1.bf16.msra.mxu0 0
    %361 = vmatprep.mubr.bf16.mxu0 0
    %362 = vmatmul.mubr.bf16.gmra.mrb[0].mxu0 %v275
    %v363 = vpop.f32.mrb[0].mxu0
    %v364 = vadd.f32 %v241, %v363
    %v365 = vpop.f32.mrb[0].mxu0
    %v366 = vpop.f32.mrb[0].mxu0
    %v367 = vadd.f32 %v244, %v366
    %v368 = vpop.f32.mrb[0].mxu0
    %369 = vmatprep.mubr.bf16.mxu0 0
    %370 = vmatmul.mubr.bf16.gmra.mrb[0].mxu0 %v276
    %v371 = vpop.f32.mrb[0].mxu0
    %v372 = vadd.f32 %v249, %v371
    %v373 = vpop.f32.mrb[0].mxu0
    %v374 = vpop.f32.mrb[0].mxu0
    %v375 = vadd.f32 %v252, %v374
    %v376 = vpop.f32.mrb[0].mxu0
    %377 = vmatprep.mubr.bf16.mxu0 0
    %378 = vmatmul.mubr.bf16.gmra.mrb[0].mxu0 %v277
    %v379 = vpop.f32.mrb[0].mxu0
    %v380 = vadd.f32 %v257, %v379
    %v381 = vpop.f32.mrb[0].mxu0
    %v382 = vpop.f32.mrb[0].mxu0
    %v383 = vadd.f32 %v260, %v382
    %v384 = vpop.f32.mrb[0].mxu0
    %385 = vdwg.mxu0
    %v386 = vld [vmem:[%s4] sm:$0x1]
    %v388 = vlaneseq
    %v389 = vshrl.u32 %v388, 7
    %v390 = vsub.s32 0, %v389
    %v391 = vrot.slane %v386, %v390
    %v393 = vadd.f32 %v364, %v391
    %v394 = vadd.f32 %v367, %v391
    %v395 = vadd.f32 %v372, %v391
    %v396 = vadd.f32 %v375, %v391
    %v397 = vadd.f32 %v380, %v391
    %v398 = vadd.f32 %v383, %v391
    %v399 = vmax.f32 %v393, 0.0
    %v400 = vmax.f32 %v394, 0.0
    %v401 = vmax.f32 %v395, 0.0
    %v402 = vmax.f32 %v396, 0.0
    %v403 = vmax.f32 %v397, 0.0
    %v404 = vmax.f32 %v398, 0.0
    %v405 = vpack.c.bf16 %v400, %v399
    %v406 = vpack.c.bf16 %v402, %v401
    %v407 = vpack.c.bf16 %v404, %v403
    %v408 = vld [vmem:[#allocation10] sm:$0xf]
    %v409 = vld [vmem:[#allocation10 + $0x4] sm:$0xf]
    %v410 = vld [vmem:[#allocation10 + $0x8] sm:$0xf]
    %v411 = vld [vmem:[#allocation10 + $0xc] sm:$0xf]
    %v412 = vld [vmem:[#allocation10 + $0x10] sm:$0xf]
    %v413 = vld [vmem:[#allocation10 + $0x14] sm:$0xf]
    %v414 = vld [vmem:[#allocation10 + $0x18] sm:$0xf]
    %v415 = vld [vmem:[#allocation10 + $0x1c] sm:$0xf]
    %v416 = vld [vmem:[#allocation10 + $0x20] sm:$0xf]
    %v417 = vld [vmem:[#allocation10 + $0x24] sm:$0xf]
    %v418 = vld [vmem:[#allocation10 + $0x28] sm:$0xf]
    %v419 = vld [vmem:[#allocation10 + $0x2c] sm:$0xf]
    %v420 = vld [vmem:[#allocation10 + $0x30] sm:$0xf]
    %v421 = vld [vmem:[#allocation10 + $0x34] sm:$0xf]
    %v422 = vld [vmem:[#allocation10 + $0x38] sm:$0xf]
    %v423 = vld [vmem:[#allocation10 + $0x3c] sm:$0xf]
    %v424 = vld [vmem:[%s6] sm:$0x1]
    %v426 = vlaneseq
    %v427 = vshrl.u32 %v426, 7
    %v428 = vsub.s32 0, %v427
    %v429 = vrot.slane %v424, %v428
    %v447 = vunpack.c.l.b16 %v408
    %v448 = vunpack.c.l.b16 %v409
    %v449 = vunpack.c.l.b16 %v410
    %v450 = vunpack.c.l.b16 %v411
    %v451 = vunpack.c.l.b16 %v412
    %v452 = vunpack.c.l.b16 %v413
    %v453 = vunpack.c.l.b16 %v414
    %v454 = vunpack.c.l.b16 %v415
    %v455 = vunpack.c.l.b16 %v416
    %v456 = vunpack.c.l.b16 %v417
    %v457 = vunpack.c.l.b16 %v418
    %v458 = vunpack.c.l.b16 %v419
    %v459 = vunpack.c.l.b16 %v420
    %v460 = vunpack.c.l.b16 %v421
    %v461 = vunpack.c.l.b16 %v422
    %v462 = vunpack.c.l.b16 %v423
    %v463 = vpack.c.b16 %v448, %v447
    %v464 = vpack.c.b16 %v450, %v449
    %v465 = vpack.c.b16 %v452, %v451
    %v466 = vpack.c.b16 %v454, %v453
    %v467 = vpack.c.b16 %v456, %v455
    %v468 = vpack.c.b16 %v458, %v457
    %v469 = vpack.c.b16 %v460, %v459
    %v470 = vpack.c.b16 %v462, %v461
    %479 = vmatprep.subr.bf16.mxu0 0
    %480 = vmatpush1.bf16.msra.mxu0 %v463
    %481 = vmatprep.subr.bf16.mxu0 0
    %482 = vmatpush1.bf16.msra.mxu0 %v464
    %483 = vmatprep.subr.bf16.mxu0 0
    %484 = vmatpush1.bf16.msra.mxu0 %v465
    %485 = vmatprep.subr.bf16.mxu0 0
    %486 = vmatpush1.bf16.msra.mxu0 %v466
    %487 = vmatprep.subr.bf16.mxu0 0
    %488 = vmatpush1.bf16.msra.mxu0 %v467
    %489 = vmatprep.subr.bf16.mxu0 0
    %490 = vmatpush1.bf16.msra.mxu0 %v468
    %491 = vmatprep.subr.bf16.mxu0 0
    %492 = vmatpush1.bf16.msra.mxu0 %v469
    %493 = vmatprep.subr.bf16.mxu0 0
    %494 = vmatpush1.bf16.msra.mxu0 %v470
    %495 = vmatprep.subr.bf16.mxu0 0
    %496 = vmatpush1.bf16.msra.mxu0 0
    %497 = vmatprep.subr.bf16.mxu0 0
    %498 = vmatpush1.bf16.msra.mxu0 0
    %499 = vmatprep.subr.bf16.mxu0 0
    %500 = vmatpush1.bf16.msra.mxu0 0
    %501 = vmatprep.subr.bf16.mxu0 0
    %502 = vmatpush1.bf16.msra.mxu0 0
    %503 = vmatprep.subr.bf16.mxu0 0
    %504 = vmatpush1.bf16.msra.mxu0 0
    %505 = vmatprep.subr.bf16.mxu0 0
    %506 = vmatpush1.bf16.msra.mxu0 0
    %507 = vmatprep.subr.bf16.mxu0 0
    %508 = vmatpush1.bf16.msra.mxu0 0
    %509 = vmatprep.subr.bf16.mxu0 0
    %510 = vmatpush1.bf16.msra.mxu0 0
    %511 = vmatprep.mubr.bf16.mxu0 0
    %512 = vmatmul.mubr.bf16.gmra.mrb[0].mxu0 %v405
    %v513 = vpop.f32.mrb[0].mxu0
    %v514 = vadd.f32 %v429, %v513
    %v515 = vpop.f32.mrb[0].mxu0
    %v516 = vpop.f32.mrb[0].mxu0
    %v517 = vadd.f32 %v429, %v516
    %v518 = vpop.f32.mrb[0].mxu0
    %519 = vmatprep.mubr.bf16.mxu0 0
    %520 = vmatmul.mubr.bf16.gmra.mrb[0].mxu0 %v406
    %v521 = vpop.f32.mrb[0].mxu0
    %v522 = vadd.f32 %v429, %v521
    %v523 = vpop.f32.mrb[0].mxu0
    %v524 = vpop.f32.mrb[0].mxu0
    %v525 = vadd.f32 %v429, %v524
    %v526 = vpop.f32.mrb[0].mxu0
    %527 = vmatprep.mubr.bf16.mxu0 0
    %528 = vmatmul.mubr.bf16.gmra.mrb[0].mxu0 %v407
    %v529 = vpop.f32.mrb[0].mxu0
    %v530 = vadd.f32 %v429, %v529
    %v531 = vpop.f32.mrb[0].mxu0
    %v532 = vpop.f32.mrb[0].mxu0
    %v533 = vadd.f32 %v429, %v532
    %v534 = vpop.f32.mrb[0].mxu0
    %535 = vdwg.mxu0
    %536 = vst [vmem:[#allocation11] sm:$0xff] %v514
    %537 = vst [vmem:[#allocation11 + $0x8] sm:$0xff] %v517
    %538 = vst [vmem:[#allocation11 + $0x10] sm:$0xff] %v522
    %539 = vst [vmem:[#allocation11 + $0x18] sm:$0xff] %v525
    %540 = vst [vmem:[#allocation11 + $0x20] sm:$0xff] %v530
    %541 = vst [vmem:[#allocation11 + $0x28] sm:$0xff] %v533
    // Predicated region
    $region50: #{tpu_custom_call.1} parent=1 // pred_check
      _
    $region51: #{tpu_custom_call.1} parent=1 // pred_check_branch
      %543 = sbr.rel (0) target = $region53
    $region52: #{tpu_custom_call.1} parent=1 // pred_region
      %s545 = ssub.s32 768, 768
      %546 = vsyncadd [#allocation4], %s545
      %s547 = sshll.u32 [#allocation11], 4
      %s548 = int_to_ptr.vmem [resolvable:$true] %s547
      %553 = dma.vmem_to_hbm [thread:$0]  %s548, 768, %s7, [#allocation4], 128, 128, 8
    $region53: #{tpu_custom_call.1} parent=1 // pred_fallthru
      _
    // Predicated region
    $region54: #{tpu_custom_call.1} parent=1 // pred_check
      _
    $region55: #{tpu_custom_call.1} parent=1 // pred_check_branch
      %555 = sbr.rel (0) target = $region57
    $region56: #{tpu_custom_call.1} parent=1 // pred_region
      %556 = dma.done [#allocation4], 768
    $region57: #{tpu_custom_call.1} parent=1 // pred_fallthru
      _
    %557 = vsyncpa [#allocation3], 1
    %558 = vsyncpa [#allocation6], 1
    %559 = vsyncpa [#allocation9], 1
    %560 = vsyncpa [#allocation4], 1

</llo_original>
